<compile_context>
chip_gen: v6e
topology: v6e:2x2x1
jax: 0.10.0
libtpu: 0.0.40
codegen_flags: <defaults>
</compile_context>

<pallas_src>
import functools

import jax
import jax.numpy as jnp
from jax.experimental import pallas as pl
from jax.experimental.pallas import tpu as pltpu

D_MODEL = 512
DROPOUT_P = 0.1
LN_EPS = 1e-5  # nn.LayerNorm default eps

# Drop iff random_u32 < p * 2^32 (integer threshold on raw bits: no signed-bit
# bias, no int->float convert per element).
_DROP_THRESHOLD = int(round(DROPOUT_P * (2.0 ** 32)))
_INV_KEEP = 1.0 / (1.0 - DROPOUT_P)

# 1024 rows x 512 cols x 4 B = 2 MiB per block; x/res/out double-buffered is
# ~12 MiB, which fits the default scoped VMEM on v5e (16 MiB) and v6e/v7x
# (32 MiB) without needing an explicit vmem_limit_bytes bump.
_MAX_TILE_ROWS = 1024


def _ln_residual(x, r, g, b):
    """Residual add + LayerNorm over the last axis, f32 statistics."""
    s = x.astype(jnp.float32) + r.astype(jnp.float32)
    mean = jnp.mean(s, axis=-1, keepdims=True)
    centered = s - mean
    var = jnp.mean(centered * centered, axis=-1, keepdims=True)
    y = centered * jax.lax.rsqrt(var + LN_EPS)
    return y * g.astype(jnp.float32) + b.astype(jnp.float32)


def _resnorm_eval_kernel(x_ref, r_ref, g_ref, b_ref, o_ref):
    y = _ln_residual(x_ref[...], r_ref[...], g_ref[...], b_ref[...])
    o_ref[...] = y.astype(o_ref.dtype)


def _resnorm_train_kernel(seed_ref, x_ref, r_ref, g_ref, b_ref, o_ref):
    y = _ln_residual(x_ref[...], r_ref[...], g_ref[...], b_ref[...])
    # Inverted dropout: keep with prob (1-p), scale survivors by 1/(1-p).
    pltpu.prng_seed(seed_ref[0] + pl.program_id(0))
    bits = pltpu.bitcast(pltpu.prng_random_bits(y.shape), jnp.uint32)
    keep = bits >= jnp.uint32(_DROP_THRESHOLD)
    y = jnp.where(keep, y * _INV_KEEP, 0.0)
    o_ref[...] = y.astype(o_ref.dtype)


@functools.partial(jax.jit, static_argnames=("training",))
def residual_norm(x, res, gamma, beta, *, training=False, seed=0):
    """x, res: (batch, seq, d_model).  Returns same shape/dtype as x."""
    batch, seq, d = x.shape
    assert d == gamma.shape[0] == beta.shape[0]
    rows = batch * seq

    # Large row tile (multiple of 8); pad rows up to a multiple of the tile so
    # the pipeline stays active and VMEM use is bounded for any input shape.
    tile_rows = min(_MAX_TILE_ROWS, rows)
    tile_rows = max(8, ((tile_rows + 7) // 8) * 8)
    rows_padded = pl.cdiv(rows, tile_rows) * tile_rows

    x2 = x.reshape(rows, d)
    r2 = res.reshape(rows, d)
    if rows_padded != rows:
        pad = rows_padded - rows
        x2 = jnp.pad(x2, ((0, pad), (0, 0)))
        r2 = jnp.pad(r2, ((0, pad), (0, 0)))
    g2 = gamma.reshape(1, d)
    b2 = beta.reshape(1, d)

    grid = (rows_padded // tile_rows,)
    row_spec = pl.BlockSpec((tile_rows, d), lambda i, *_: (i, 0))
    par_spec = pl.BlockSpec((1, d), lambda i, *_: (0, 0))  # gamma/beta resident

    compiler_params = pltpu.CompilerParams(
        dimension_semantics=("parallel",)  # rows are independent
    )

    if not training:
        out = pl.pallas_call(
            _resnorm_eval_kernel,
            out_shape=jax.ShapeDtypeStruct((rows_padded, d), x.dtype),
            grid_spec=pltpu.PrefetchScalarGridSpec(
                num_scalar_prefetch=0,
                grid=grid,
                in_specs=[row_spec, row_spec, par_spec, par_spec],
                out_specs=row_spec,
            ),
            compiler_params=compiler_params,
        )(x2, r2, g2, b2)
    else:
        seed_arr = jnp.asarray([seed], dtype=jnp.int32)
        out = pl.pallas_call(
            _resnorm_train_kernel,
            out_shape=jax.ShapeDtypeStruct((rows_padded, d), x.dtype),
            grid_spec=pltpu.PrefetchScalarGridSpec(
                num_scalar_prefetch=1,
                grid=grid,
                in_specs=[row_spec, row_spec, par_spec, par_spec],
                out_specs=row_spec,
            ),
            compiler_params=compiler_params,
        )(seed_arr, x2, r2, g2, b2)

    return out[:rows].reshape(batch, seq, d)


if __name__ == "__main__":
    key = jax.random.PRNGKey(0)
    kx, kr = jax.random.split(key)

    batch, seq = 2, 8
    x = jax.random.normal(kx, (batch, seq, D_MODEL), dtype=jnp.float32)
    res = jax.random.normal(kr, (batch, seq, D_MODEL), dtype=jnp.float32)

    # LayerNorm parameters: PyTorch initializes gamma=1, beta=0
    gamma = jnp.ones((D_MODEL,), dtype=jnp.float32)
    beta = jnp.zeros((D_MODEL,), dtype=jnp.float32)

    out = jax.block_until_ready(
        residual_norm(x, res, gamma, beta, training=False)
    )

    # sanity check against a pure-JAX reference (eval mode: dropout = identity)
    s = x + res
    mean = jnp.mean(s, axis=-1, keepdims=True)
    var = jnp.mean((s - mean) ** 2, axis=-1, keepdims=True)
    ref = (s - mean) / jnp.sqrt(var + LN_EPS) * gamma + beta
    assert jnp.allclose(out, ref, atol=1e-5, rtol=1e-5), "mismatch vs reference"

    # Exercise the train-mode (dropout) path only on real TPU hardware: the
    # on-chip PRNG primitives (prng_seed / prng_random_bits) have no
    # CPU/interpret-mode lowering.
    if jax.default_backend() == "tpu":
        out_tr = jax.block_until_ready(
            residual_norm(x, res, gamma, beta, training=True, seed=123)
        )
        assert out_tr.shape == out.shape

    print("KERNEL_OK")
</pallas_src>

<mosaic_0001>
module attributes {stable_mosaic.version = 11 : i64} {
  func.func @_resnorm_eval_kernel(%arg0: i32, %arg1: memref<16x512xf32, #tpu.memory_space<vmem>>, %arg2: memref<16x512xf32, #tpu.memory_space<vmem>>, %arg3: memref<1x512xf32, #tpu.memory_space<vmem>>, %arg4: memref<1x512xf32, #tpu.memory_space<vmem>>, %arg5: memref<16x512xf32, #tpu.memory_space<vmem>>) attributes {dimension_semantics = [#tpu.dimension_semantics<parallel>], iteration_bounds = array<i64: 1>, scalar_prefetch = 0 : i64, scratch_operands = 0 : i64, tpu.core_type = #tpu.core_type<tc>, window_params = [{transform_indices = @transform_0, window_bounds = array<i64: 16, 512>}, {transform_indices = @transform_1, window_bounds = array<i64: 16, 512>}, {pipeline_mode = #tpu.pipeline_mode<synchronous>, transform_indices = @transform_2, window_bounds = array<i64: 1, 512>}, {pipeline_mode = #tpu.pipeline_mode<synchronous>, transform_indices = @transform_3, window_bounds = array<i64: 1, 512>}, {transform_indices = @transform_4, window_bounds = array<i64: 16, 512>}]} {
    %c0 = arith.constant 0 : index
    %c0_0 = arith.constant 0 : index
    %0 = vector.load %arg1[%c0, %c0_0] : memref<16x512xf32, #tpu.memory_space<vmem>>, vector<16x512xf32>
    %c0_1 = arith.constant 0 : index
    %c0_2 = arith.constant 0 : index
    %1 = vector.load %arg2[%c0_1, %c0_2] : memref<16x512xf32, #tpu.memory_space<vmem>>, vector<16x512xf32>
    %c0_3 = arith.constant 0 : index
    %c0_4 = arith.constant 0 : index
    %2 = vector.load %arg3[%c0_3, %c0_4] : memref<1x512xf32, #tpu.memory_space<vmem>>, vector<1x512xf32>
    %c0_5 = arith.constant 0 : index
    %c0_6 = arith.constant 0 : index
    %3 = vector.load %arg4[%c0_5, %c0_6] : memref<1x512xf32, #tpu.memory_space<vmem>>, vector<1x512xf32>
    %4 = arith.addf %0, %1 : vector<16x512xf32>
    %cst = arith.constant dense<0.000000e+00> : vector<16xf32>
    %5 = vector.multi_reduction <add>, %4, %cst [1] : vector<16x512xf32> to vector<16xf32>
    %6 = vector.shape_cast %5 : vector<16xf32> to vector<16x1xf32>
    %cst_7 = arith.constant 5.120000e+02 : f32
    %7 = vector.broadcast %cst_7 : f32 to vector<16x1xf32>
    %8 = arith.divf %6, %7 : vector<16x1xf32>
    %9 = vector.broadcast %8 : vector<16x1xf32> to vector<16x512xf32>
    %10 = arith.subf %4, %9 : vector<16x512xf32>
    %11 = arith.mulf %10, %10 : vector<16x512xf32>
    %cst_8 = arith.constant dense<0.000000e+00> : vector<16xf32>
    %12 = vector.multi_reduction <add>, %11, %cst_8 [1] : vector<16x512xf32> to vector<16xf32>
    %13 = vector.shape_cast %12 : vector<16xf32> to vector<16x1xf32>
    %cst_9 = arith.constant 5.120000e+02 : f32
    %14 = vector.broadcast %cst_9 : f32 to vector<16x1xf32>
    %15 = arith.divf %13, %14 : vector<16x1xf32>
    %cst_10 = arith.constant 9.99999974E-6 : f32
    %16 = vector.broadcast %cst_10 : f32 to vector<16x1xf32>
    %17 = arith.addf %15, %16 : vector<16x1xf32>
    %18 = math.rsqrt %17 : vector<16x1xf32>
    %19 = vector.broadcast %18 : vector<16x1xf32> to vector<16x512xf32>
    %20 = arith.mulf %10, %19 : vector<16x512xf32>
    %21 = vector.broadcast %2 : vector<1x512xf32> to vector<16x512xf32>
    %22 = arith.mulf %20, %21 : vector<16x512xf32>
    %23 = vector.broadcast %3 : vector<1x512xf32> to vector<16x512xf32>
    %24 = arith.addf %22, %23 : vector<16x512xf32>
    %c0_11 = arith.constant 0 : index
    %c0_12 = arith.constant 0 : index
    %25 = vector.load %arg5[%c0_11, %c0_12] : memref<16x512xf32, #tpu.memory_space<vmem>>, vector<16x512xf32>
    tpu.vector_store %arg5[%c0_11, %c0_12], %24 {strides = array<i32>} : memref<16x512xf32, #tpu.memory_space<vmem>>, vector<16x512xf32>,
    return
  }
  func.func @transform_0(%arg0: i32) -> (i32, i32) {
    %c0_i32 = arith.constant 0 : i32
    %c0_i32_0 = arith.constant 0 : i32
    return %arg0, %c0_i32 : i32, i32
  }
  func.func @transform_1(%arg0: i32) -> (i32, i32) {
    %c0_i32 = arith.constant 0 : i32
    %c0_i32_0 = arith.constant 0 : i32
    return %arg0, %c0_i32 : i32, i32
  }
  func.func @transform_2(%arg0: i32) -> (i32, i32) {
    %c0_i32 = arith.constant 0 : i32
    %c0_i32_0 = arith.constant 0 : i32
    %c0_i32_1 = arith.constant 0 : i32
    return %c0_i32, %c0_i32_0 : i32, i32
  }
  func.func @transform_3(%arg0: i32) -> (i32, i32) {
    %c0_i32 = arith.constant 0 : i32
    %c0_i32_0 = arith.constant 0 : i32
    %c0_i32_1 = arith.constant 0 : i32
    return %c0_i32, %c0_i32_0 : i32, i32
  }
  func.func @transform_4(%arg0: i32) -> (i32, i32) {
    %c0_i32 = arith.constant 0 : i32
    %c0_i32_0 = arith.constant 0 : i32
    return %arg0, %c0_i32 : i32, i32
  }
}

</mosaic_0001>

<llo_original>
// kernel: residual_norm.1
$region0: #{residual_norm.1}
  #allocation0 [shape = 'u32[]', space=smem, size = 0x4, offset = 0x4, fixed_abs, tag = 'smem constant byte address 0x4 - core index']
  #allocation1 [shape = 'u32[144,128]{1,0:T(1,128)}', space=vmem, size = 0x12000, scoped, tag = 'internal scratch']
  %s0 = inlined_call_operand.hbm [shape: f32[16,512], index: 0, kind: input, shape index: {}]
  %s1 = inlined_call_operand.hbm [shape: f32[16,512], index: 1, kind: input, shape index: {}]
  %s2 = inlined_call_operand.vmem [shape: f32[1,512], index: 2, kind: input, shape index: {}]
  %s3 = inlined_call_operand.vmem [shape: f32[1,512], index: 3, kind: input, shape index: {}]
  %s4 = inlined_call_operand.hbm [shape: f32[16,512], index: 4, kind: output, shape index: {}]
  %s5 = sld [smem:[#allocation0]]
  $region34: #{residual_norm.1} parent=0
    _
  %s7 = ssub.s32 1, %s5
  %s8 = scalar_select 0, %s7, %s5
  $region1: #{residual_norm.1} parent=0
    #allocation2 [shape = 'u8[32768]{0}', space=vmem, size = 0x8000, scoped, tag = 'input window, operand 0, single buffered']
    #allocation3 [shape = 's32[1]{0}', space=sflag, size = 0x4, scoped, tag = 'scoped memory for residual_norm.1']
    #allocation4 [shape = 's32[1]{0}', space=sflag, size = 0x4, scoped, tag = 'scoped memory for residual_norm.1']
    #allocation5 [shape = 'u8[32768]{0}', space=vmem, size = 0x8000, scoped, tag = 'input window, operand 1, single buffered']
    #allocation6 [shape = 's32[1]{0}', space=sflag, size = 0x4, scoped, tag = 'scoped memory for residual_norm.1']
    #allocation7 [shape = 'u8[32768]{0}', space=vmem, size = 0x8000, scoped, tag = 'output window, operand 0, single buffered']
    %9 = vsyncpa [#allocation3], 0
    %10 = vsyncpa [#allocation6], 0
    %11 = vsyncpa [#allocation4], 0
    // Predicated region
    $region2: #{residual_norm.1} parent=1 // pred_check
      _
    $region3: #{residual_norm.1} parent=1 // pred_check_branch
      %13 = sbr.rel (0) target = $region5
    $region4: #{residual_norm.1} parent=1 // pred_region
      %s15 = ssub.s32 1024, 1024
      %16 = vsyncadd [#allocation3], %s15
      %s17 = sshll.u32 [#allocation2], 4
      %s18 = int_to_ptr.vmem [resolvable:$true] %s17
      %23 = dma.hbm_to_vmem [thread:$0]  %s0, 1024, %s18, [#allocation3], 512, 512, 32
    $region5: #{residual_norm.1} parent=1 // pred_fallthru
      _
    // Predicated region
    $region6: #{residual_norm.1} parent=1 // pred_check
      _
    $region7: #{residual_norm.1} parent=1 // pred_check_branch
      %25 = sbr.rel (0) target = $region9
    $region8: #{residual_norm.1} parent=1 // pred_region
      %s27 = ssub.s32 1024, 1024
      %28 = vsyncadd [#allocation6], %s27
      %s29 = sshll.u32 [#allocation5], 4
      %s30 = int_to_ptr.vmem [resolvable:$true] %s29
      %35 = dma.hbm_to_vmem [thread:$0]  %s1, 1024, %s30, [#allocation6], 512, 512, 32
    $region9: #{residual_norm.1} parent=1 // pred_fallthru
      _
    // Predicated region
    $region10: #{residual_norm.1} parent=1 // pred_check
      _
    $region11: #{residual_norm.1} parent=1 // pred_check_branch
      %37 = sbr.rel (0) target = $region13
    $region12: #{residual_norm.1} parent=1 // pred_region
      _
    $region13: #{residual_norm.1} parent=1 // pred_fallthru
      _
    // Predicated region
    $region14: #{residual_norm.1} parent=1 // pred_check
      _
    $region15: #{residual_norm.1} parent=1 // pred_check_branch
      %39 = sbr.rel (0) target = $region17
    $region16: #{residual_norm.1} parent=1 // pred_region
      _
    $region17: #{residual_norm.1} parent=1 // pred_fallthru
      _
    // Predicated region
    $region18: #{residual_norm.1} parent=1 // pred_check
      _
    $region19: #{residual_norm.1} parent=1 // pred_check_branch
      %41 = sbr.rel (0) target = $region21
    $region20: #{residual_norm.1} parent=1 // pred_region
      %42 = dma.done [#allocation3], 1024
    $region21: #{residual_norm.1} parent=1 // pred_fallthru
      _
    // Predicated region
    $region22: #{residual_norm.1} parent=1 // pred_check
      _
    $region23: #{residual_norm.1} parent=1 // pred_check_branch
      %44 = sbr.rel (0) target = $region25
    $region24: #{residual_norm.1} parent=1 // pred_region
      %45 = dma.done [#allocation6], 1024
    $region25: #{residual_norm.1} parent=1 // pred_fallthru
      _
    %v46 = vld [vmem:[#allocation2] sm:$0xff]
    %v47 = vld [vmem:[#allocation2 + $0x8] sm:$0xff]
    %v48 = vld [vmem:[#allocation2 + $0x10] sm:$0xff]
    %v49 = vld [vmem:[#allocation2 + $0x18] sm:$0xff]
    %v50 = vld [vmem:[#allocation2 + $0x20] sm:$0xff]
    %v51 = vld [vmem:[#allocation2 + $0x28] sm:$0xff]
    %v52 = vld [vmem:[#allocation2 + $0x30] sm:$0xff]
    %v53 = vld [vmem:[#allocation2 + $0x38] sm:$0xff]
    %v54 = vld [vmem:[#allocation5] sm:$0xff]
    %v55 = vld [vmem:[#allocation5 + $0x8] sm:$0xff]
    %v56 = vld [vmem:[#allocation5 + $0x10] sm:$0xff]
    %v57 = vld [vmem:[#allocation5 + $0x18] sm:$0xff]
    %v58 = vld [vmem:[#allocation5 + $0x20] sm:$0xff]
    %v59 = vld [vmem:[#allocation5 + $0x28] sm:$0xff]
    %v60 = vld [vmem:[#allocation5 + $0x30] sm:$0xff]
    %v61 = vld [vmem:[#allocation5 + $0x38] sm:$0xff]
    %v62 = vld [vmem:[%s2] sm:$0xf]
    %v63 = vld [vmem:[%s3] sm:$0xf]
    %v64 = vadd.f32 %v46, %v54
    %v65 = vadd.f32 %v47, %v55
    %v66 = vadd.f32 %v48, %v56
    %v67 = vadd.f32 %v49, %v57
    %v68 = vadd.f32 %v50, %v58
    %v69 = vadd.f32 %v51, %v59
    %v70 = vadd.f32 %v52, %v60
    %v71 = vadd.f32 %v53, %v61
    %v72 = vadd.f32 %v64, %v65
    %v73 = vadd.f32 %v72, %v66
    %v74 = vadd.f32 %v73, %v67
    %75 = vadd.xlane.f32.xlu0 %v74
    %v76 = vpop.xlane.xlu0 %75
    %v77 = vadd.f32 %v68, %v69
    %v78 = vadd.f32 %v77, %v70
    %v79 = vadd.f32 %v78, %v71
    %80 = vadd.xlane.f32.xlu0 %v79
    %v81 = vpop.xlane.xlu0 %80
    %v82 = vrcp.pop 512.0
    %v83 = vmul.f32 %v76, %v82
    %v84 = vmul.f32 %v81, %v82
    %v85 = vsub.f32 %v64, %v83
    %v86 = vsub.f32 %v65, %v83
    %v87 = vsub.f32 %v66, %v83
    %v88 = vsub.f32 %v67, %v83
    %v89 = vsub.f32 %v68, %v84
    %v90 = vsub.f32 %v69, %v84
    %v91 = vsub.f32 %v70, %v84
    %v92 = vsub.f32 %v71, %v84
    %v93 = vmul.f32 %v85, %v85
    %v94 = vmul.f32 %v86, %v86
    %v95 = vmul.f32 %v87, %v87
    %v96 = vmul.f32 %v88, %v88
    %v97 = vmul.f32 %v89, %v89
    %v98 = vmul.f32 %v90, %v90
    %v99 = vmul.f32 %v91, %v91
    %v100 = vmul.f32 %v92, %v92
    %v101 = vadd.f32 %v93, %v94
    %v102 = vadd.f32 %v101, %v95
    %v103 = vadd.f32 %v102, %v96
    %104 = vadd.xlane.f32.xlu0 %v103
    %v105 = vpop.xlane.xlu0 %104
    %v106 = vadd.f32 %v97, %v98
    %v107 = vadd.f32 %v106, %v99
    %v108 = vadd.f32 %v107, %v100
    %109 = vadd.xlane.f32.xlu0 %v108
    %v110 = vpop.xlane.xlu0 %109
    %v111 = vmul.f32 %v105, %v82
    %v112 = vmul.f32 %v110, %v82
    %v113 = vadd.f32 %v111, 1e-05
    %v114 = vadd.f32 %v112, 1e-05
    %v115 = vrsqrt.pop %v113
    %v116 = vrsqrt.pop %v114
    %v117 = vmul.f32 %v85, %v115
    %v118 = vmul.f32 %v86, %v115
    %v119 = vmul.f32 %v87, %v115
    %v120 = vmul.f32 %v88, %v115
    %v121 = vmul.f32 %v89, %v116
    %v122 = vmul.f32 %v90, %v116
    %v123 = vmul.f32 %v91, %v116
    %v124 = vmul.f32 %v92, %v116
    %v126 = vlaneseq
    %v127 = vshrl.u32 %v126, 7
    %v128 = vsub.s32 0, %v127
    %v129 = vrot.slane %v62, %v128
    %v130 = vlaneseq
    %v131 = vshrl.u32 %v130, 7
    %v132 = vsub.s32 1, %v131
    %v133 = vrot.slane %v62, %v132
    %v134 = vlaneseq
    %v135 = vshrl.u32 %v134, 7
    %v136 = vsub.s32 2, %v135
    %v137 = vrot.slane %v62, %v136
    %v138 = vlaneseq
    %v139 = vshrl.u32 %v138, 7
    %v140 = vsub.s32 3, %v139
    %v141 = vrot.slane %v62, %v140
    %v146 = vmul.f32 %v117, %v129
    %v147 = vmul.f32 %v118, %v133
    %v148 = vmul.f32 %v119, %v137
    %v149 = vmul.f32 %v120, %v141
    %v150 = vmul.f32 %v121, %v129
    %v151 = vmul.f32 %v122, %v133
    %v152 = vmul.f32 %v123, %v137
    %v153 = vmul.f32 %v124, %v141
    %v155 = vlaneseq
    %v156 = vshrl.u32 %v155, 7
    %v157 = vsub.s32 0, %v156
    %v158 = vrot.slane %v63, %v157
    %v159 = vlaneseq
    %v160 = vshrl.u32 %v159, 7
    %v161 = vsub.s32 1, %v160
    %v162 = vrot.slane %v63, %v161
    %v163 = vlaneseq
    %v164 = vshrl.u32 %v163, 7
    %v165 = vsub.s32 2, %v164
    %v166 = vrot.slane %v63, %v165
    %v167 = vlaneseq
    %v168 = vshrl.u32 %v167, 7
    %v169 = vsub.s32 3, %v168
    %v170 = vrot.slane %v63, %v169
    %v175 = vadd.f32 %v146, %v158
    %v176 = vadd.f32 %v147, %v162
    %v177 = vadd.f32 %v148, %v166
    %v178 = vadd.f32 %v149, %v170
    %v179 = vadd.f32 %v150, %v158
    %v180 = vadd.f32 %v151, %v162
    %v181 = vadd.f32 %v152, %v166
    %v182 = vadd.f32 %v153, %v170
    %183 = vst [vmem:[#allocation7] sm:$0xff] %v175
    %184 = vst [vmem:[#allocation7 + $0x8] sm:$0xff] %v176
    %185 = vst [vmem:[#allocation7 + $0x10] sm:$0xff] %v177
    %186 = vst [vmem:[#allocation7 + $0x18] sm:$0xff] %v178
    %187 = vst [vmem:[#allocation7 + $0x20] sm:$0xff] %v179
    %188 = vst [vmem:[#allocation7 + $0x28] sm:$0xff] %v180
    %189 = vst [vmem:[#allocation7 + $0x30] sm:$0xff] %v181
    %190 = vst [vmem:[#allocation7 + $0x38] sm:$0xff] %v182
    // Predicated region
    $region26: #{residual_norm.1} parent=1 // pred_check
      _
    $region27: #{residual_norm.1} parent=1 // pred_check_branch
      %192 = sbr.rel (0) target = $region29
    $region28: #{residual_norm.1} parent=1 // pred_region
      %s194 = ssub.s32 1024, 1024
      %195 = vsyncadd [#allocation4], %s194
      %s196 = sshll.u32 [#allocation7], 4
      %s197 = int_to_ptr.vmem [resolvable:$true] %s196
      %202 = dma.vmem_to_hbm [thread:$0]  %s197, 1024, %s4, [#allocation4], 512, 512, 32
    $region29: #{residual_norm.1} parent=1 // pred_fallthru
      _
    // Predicated region
    $region30: #{residual_norm.1} parent=1 // pred_check
      _
    $region31: #{residual_norm.1} parent=1 // pred_check_branch
      %204 = sbr.rel (0) target = $region33
    $region32: #{residual_norm.1} parent=1 // pred_region
      %205 = dma.done [#allocation4], 1024
    $region33: #{residual_norm.1} parent=1 // pred_fallthru
      _
    %206 = vsyncpa [#allocation3], 1
    %207 = vsyncpa [#allocation6], 1
    %208 = vsyncpa [#allocation4], 1

</llo_original>
